<compile_context>
chip_gen: v6e
topology: v6e:2x2x1
jax: 0.10.0
libtpu: 0.0.40
codegen_flags: <defaults>
</compile_context>

<pallas_src>
import functools

import jax
import jax.numpy as jnp
from jax.experimental import pallas as pl
from jax.experimental.pallas import tpu as pltpu

LANE = 128          # channel padding unit (lane width)
DEF_TILE_M = 256    # pixel-row tile for the 1x1-conv (matmul) kernels
DEF_TILE_N = 128    # Cout tile (lane-dense output)
DEF_TILE_H = 8      # output-row tile for the 3x3 kernel


def _round_up(x, m):
    return (x + m - 1) // m * m


def _pick_divisor(n, max_t):
    for t in range(min(max_t, n), 0, -1):
        if n % t == 0:
            return t
    return 1


# ---------------------------------------------------------------------------
# 1x1 conv (+ folded BN) as a tiled matmul, fused bias / residual / relu.
# ---------------------------------------------------------------------------
def _conv1x1_kernel(x_ref, w_ref, b_ref, *rest, apply_relu, has_residual):
    if has_residual:
        r_ref, o_ref = rest
    else:
        (o_ref,) = rest
    acc = jnp.dot(x_ref[...], w_ref[...], preferred_element_type=jnp.float32)
    y = acc + b_ref[...].astype(jnp.float32)
    if has_residual:
        y = y + r_ref[...].astype(jnp.float32)
    if apply_relu:
        y = jnp.maximum(y, 0.0)
    o_ref[...] = y.astype(o_ref.dtype)


def _conv1x1_bn_act(x_mat, w_mat, bias_row, *, apply_relu, residual=None,
                    tile_m=DEF_TILE_M, tile_n=DEF_TILE_N):
    """x_mat: (M, K), w_mat: (K, Cout), bias_row: (1, Cout).  K, Cout % 128 == 0."""
    M, K = x_mat.shape
    _, Cout = w_mat.shape
    tile_m = min(tile_m, _round_up(M, 8))
    tile_n = min(tile_n, Cout)
    M_pad = _round_up(M, tile_m)
    if M_pad != M:
        x_mat = jnp.pad(x_mat, ((0, M_pad - M), (0, 0)))
        if residual is not None:
            residual = jnp.pad(residual, ((0, M_pad - M), (0, 0)))

    in_specs = [
        pl.BlockSpec((tile_m, K), lambda i, j: (i, 0)),
        pl.BlockSpec((K, tile_n), lambda i, j: (0, j)),
        pl.BlockSpec((1, tile_n), lambda i, j: (0, j)),
    ]
    args = [x_mat, w_mat, bias_row]
    if residual is not None:
        in_specs.append(pl.BlockSpec((tile_m, tile_n), lambda i, j: (i, j)))
        args.append(residual)

    kern = functools.partial(_conv1x1_kernel, apply_relu=apply_relu,
                             has_residual=residual is not None)
    out = pl.pallas_call(
        kern,
        out_shape=jax.ShapeDtypeStruct((M_pad, Cout), x_mat.dtype),
        grid=(M_pad // tile_m, Cout // tile_n),
        in_specs=in_specs,
        out_specs=pl.BlockSpec((tile_m, tile_n), lambda i, j: (i, j)),
        compiler_params=pltpu.CompilerParams(
            dimension_semantics=("parallel", "parallel"),
            vmem_limit_bytes=32 * 1024 * 1024),
    )(*args)
    return out[:M]


# ---------------------------------------------------------------------------
# 3x3 conv (+ folded BN) + ReLU, stride s, spatial padding = 1.
# ---------------------------------------------------------------------------
def _conv3x3_kernel(x_hbm, w_ref, b_ref, o_ref, xbuf, sem, *, stride):
    n = pl.program_id(0)
    h = pl.program_id(1)
    KH, KW, Cin, Cout_t = w_ref.shape
    _, tile_h, Wo, _ = o_ref.shape
    rows_in = (tile_h - 1) * stride + KH

    # DMA the haloed row-slab this output tile needs from HBM into VMEM.
    row0 = pl.multiple_of(h * (tile_h * stride), tile_h * stride)
    cp = pltpu.make_async_copy(x_hbm.at[n, pl.ds(row0, rows_in)], xbuf, sem.at[0])
    cp.start()
    cp.wait()

    acc = jnp.zeros((tile_h * Wo, Cout_t), jnp.float32)
    if stride == 1:
        for ky in range(KH):
            for kx in range(KW):
                xs = xbuf[pl.ds(ky, tile_h), pl.ds(kx, Wo), :]
                acc = acc + jnp.dot(xs.reshape(tile_h * Wo, Cin),
                                    w_ref[ky, kx],
                                    preferred_element_type=jnp.float32)
    else:
        x = xbuf[...]
        for ky in range(KH):
            for kx in range(KW):
                xs = jax.lax.slice(
                    x, (ky, kx, 0),
                    (ky + (tile_h - 1) * stride + 1,
                     kx + (Wo - 1) * stride + 1, Cin),
                    (stride, stride, 1))
                acc = acc + jnp.dot(xs.reshape(tile_h * Wo, Cin),
                                    w_ref[ky, kx],
                                    preferred_element_type=jnp.float32)

    y = acc + b_ref[...].astype(jnp.float32)
    y = jnp.maximum(y, 0.0)
    o_ref[...] = y.reshape(1, tile_h, Wo, Cout_t).astype(o_ref.dtype)


def _conv3x3_bn_relu(x_nhwc, w_hwio, bias_row, *, stride,
                     tile_n=DEF_TILE_N, max_tile_h=DEF_TILE_H):
    N, H, W, Cin = x_nhwc.shape
    KH, KW, _, Cout = w_hwio.shape
    # Spatial zero-padding (padding=1) done once in the wrapper.
    xp = jnp.pad(x_nhwc, ((0, 0), (1, 1), (1, 1), (0, 0)))
    Wp = W + 2
    Ho = (H + 2 - KH) // stride + 1
    Wo = (W + 2 - KW) // stride + 1
    tile_h = _pick_divisor(Ho, max_tile_h)
    tile_n = min(tile_n, Cout)
    rows_in = (tile_h - 1) * stride + KH

    kern = functools.partial(_conv3x3_kernel, stride=stride)
    return pl.pallas_call(
        kern,
        out_shape=jax.ShapeDtypeStruct((N, Ho, Wo, Cout), x_nhwc.dtype),
        grid=(N, Ho // tile_h, Cout // tile_n),
        in_specs=[
            pl.BlockSpec(memory_space=pl.ANY),                              # padded x (HBM)
            pl.BlockSpec((KH, KW, Cin, tile_n), lambda n, h, j: (0, 0, 0, j)),
            pl.BlockSpec((1, tile_n), lambda n, h, j: (0, j)),
        ],
        out_specs=pl.BlockSpec((1, tile_h, Wo, tile_n),
                               lambda n, h, j: (n, h, 0, j)),
        scratch_shapes=[
            pltpu.VMEM((rows_in, Wp, Cin), x_nhwc.dtype),
            pltpu.SemaphoreType.DMA((1,)),
        ],
        compiler_params=pltpu.CompilerParams(
            dimension_semantics=("parallel", "parallel", "parallel"),
            vmem_limit_bytes=32 * 1024 * 1024),
    )(xp, w_hwio, bias_row)


# ---------------------------------------------------------------------------
# BN folding + channel padding helpers (wrapper-side, one-time cost).
# ---------------------------------------------------------------------------
def _fold_bn(w_oihw, gamma, beta, rmean, rvar, eps=1e-5):
    scale = gamma / jnp.sqrt(rvar + eps)
    w_f = w_oihw * scale[:, None, None, None]
    b_f = beta - rmean * scale
    return w_f, b_f


def _prep_conv(w_oihw, bias, cin_pad, cout_pad, dtype):
    """OIHW -> HWIO, zero-pad channels to lane multiples; bias -> (1, cout_pad) f32."""
    o_, i_ = w_oihw.shape[0], w_oihw.shape[1]
    w = jnp.transpose(w_oihw, (2, 3, 1, 0))
    w = jnp.pad(w, ((0, 0), (0, 0), (0, cin_pad - i_), (0, cout_pad - o_)))
    b = jnp.pad(bias, (0, cout_pad - o_)).reshape(1, cout_pad)
    return w.astype(dtype), b.astype(jnp.float32)


# ---------------------------------------------------------------------------
# Bottleneck forward (PyTorch NCHW interface).
# ---------------------------------------------------------------------------
def bottleneck_forward(x_nchw, params, *, stride=1, eps=1e-5):
    N, Cin, H, W = x_nchw.shape
    planes = params['w1'].shape[0]
    Cout = params['w3'].shape[0]                 # planes * expansion
    has_ds = 'wd' in params
    dtype = x_nchw.dtype

    Ci_p = _round_up(Cin, LANE)
    Pl_p = _round_up(planes, LANE)
    Co_p = _round_up(Cout, LANE)

    # NCHW -> NHWC once at the module boundary; channels zero-padded to lanes.
    x = jnp.transpose(x_nchw, (0, 2, 3, 1))
    x_p = jnp.pad(x, ((0, 0), (0, 0), (0, 0), (0, Ci_p - Cin)))

    # Fold eval-mode BN into conv weights (scale) and biases.
    w1, b1 = _fold_bn(params['w1'], params['g1'], params['be1'],
                      params['rm1'], params['rv1'], eps)
    w2, b2 = _fold_bn(params['w2'], params['g2'], params['be2'],
                      params['rm2'], params['rv2'], eps)
    w3, b3 = _fold_bn(params['w3'], params['g3'], params['be3'],
                      params['rm3'], params['rv3'], eps)
    w1m, b1r = _prep_conv(w1, b1, Ci_p, Pl_p, dtype)
    w2m, b2r = _prep_conv(w2, b2, Pl_p, Pl_p, dtype)
    w3m, b3r = _prep_conv(w3, b3, Pl_p, Co_p, dtype)

    # conv1 (1x1) + bn1 + relu: channel matmul over flattened pixels.
    h1 = _conv1x1_bn_act(x_p.reshape(N * H * W, Ci_p),
                         w1m.reshape(Ci_p, Pl_p), b1r, apply_relu=True)
    h1 = h1.reshape(N, H, W, Pl_p)

    # conv2 (3x3, stride, pad=1) + bn2 + relu.
    h2 = _conv3x3_bn_relu(h1, w2m, b2r, stride=stride)
    _, Ho, Wo, _ = h2.shape

    # residual branch.
    if has_ds:
        wd, bd = _fold_bn(params['wd'], params['gd'], params['bed'],
                          params['rmd'], params['rvd'], eps)
        wdm, bdr = _prep_conv(wd, bd, Ci_p, Co_p, dtype)
        x_ds = x_p[:, ::stride, ::stride, :]
        res = _conv1x1_bn_act(x_ds.reshape(N * Ho * Wo, Ci_p),
                              wdm.reshape(Ci_p, Co_p), bdr, apply_relu=False)
    else:
        assert stride == 1 and Ci_p == Co_p and Cin == Cout, \
            "identity residual requires stride=1 and inplanes == planes*4"
        res = x_p.reshape(N * H * W, Ci_p)
    res = res.astype(dtype)

    # conv3 (1x1) + bn3, fused residual add + final relu in the epilogue.
    out = _conv1x1_bn_act(h2.reshape(N * Ho * Wo, Pl_p),
                          w3m.reshape(Pl_p, Co_p), b3r,
                          apply_relu=True, residual=res)
    out = out.reshape(N, Ho, Wo, Co_p)[..., :Cout]
    return jnp.transpose(out, (0, 3, 1, 2)).astype(dtype)


# ---------------------------------------------------------------------------
# Parameter init mirroring nn.Conv2d / nn.BatchNorm2d shapes.
# ---------------------------------------------------------------------------
def make_bottleneck_params(key, inplanes, planes, *, downsample=False):
    expansion = 4
    keys = jax.random.split(key, 8)

    def conv_w(k, o, i, ks):
        bound = 1.0 / ((i * ks * ks) ** 0.5)
        return jax.random.uniform(k, (o, i, ks, ks), jnp.float32, -bound, bound)

    def bn(k, c):
        k1, k2, k3, k4 = jax.random.split(k, 4)
        return (jax.random.uniform(k1, (c,), jnp.float32, 0.5, 1.5),    # gamma
                jax.random.uniform(k2, (c,), jnp.float32, -0.5, 0.5),   # beta
                0.1 * jax.random.normal(k3, (c,), jnp.float32),         # running_mean
                jax.random.uniform(k4, (c,), jnp.float32, 0.5, 1.5))    # running_var

    p = {}
    p['w1'] = conv_w(keys[0], planes, inplanes, 1)
    p['g1'], p['be1'], p['rm1'], p['rv1'] = bn(keys[1], planes)
    p['w2'] = conv_w(keys[2], planes, planes, 3)
    p['g2'], p['be2'], p['rm2'], p['rv2'] = bn(keys[3], planes)
    p['w3'] = conv_w(keys[4], planes * expansion, planes, 1)
    p['g3'], p['be3'], p['rm3'], p['rv3'] = bn(keys[5], planes * expansion)
    if downsample:
        p['wd'] = conv_w(keys[6], planes * expansion, inplanes, 1)
        p['gd'], p['bed'], p['rmd'], p['rvd'] = bn(keys[7], planes * expansion)
    return p


# ---------------------------------------------------------------------------
# Pure-JAX reference.
# ---------------------------------------------------------------------------
def _reference_bottleneck(x, p, *, stride=1, eps=1e-5):
    def conv(x, w, s, pad):
        return jax.lax.conv_general_dilated(
            x, w, (s, s), ((pad, pad), (pad, pad)),
            dimension_numbers=('NCHW', 'OIHW', 'NCHW'))

    def bn(x, g, b, rm, rv):
        return ((x - rm[None, :, None, None])
                / jnp.sqrt(rv[None, :, None, None] + eps)
                * g[None, :, None, None] + b[None, :, None, None])

    out = jnp.maximum(bn(conv(x, p['w1'], 1, 0),
                         p['g1'], p['be1'], p['rm1'], p['rv1']), 0.0)
    out = jnp.maximum(bn(conv(out, p['w2'], stride, 1),
                         p['g2'], p['be2'], p['rm2'], p['rv2']), 0.0)
    out = bn(conv(out, p['w3'], 1, 0), p['g3'], p['be3'], p['rm3'], p['rv3'])
    if 'wd' in p:
        res = bn(conv(x, p['wd'], stride, 0),
                 p['gd'], p['bed'], p['rmd'], p['rvd'])
    else:
        res = x
    return jnp.maximum(out + res, 0.0)


if __name__ == "__main__":
    key = jax.random.PRNGKey(0)
    kx, kp = jax.random.split(key)

    # Bottleneck(inplanes=16, planes=4, stride=1, downsample=None)
    # (inplanes == planes * expansion so the identity residual is valid)
    inplanes, planes, stride = 16, 4, 1
    N, H, W = 2, 16, 16

    x = jax.random.normal(kx, (N, inplanes, H, W), jnp.float32)   # NCHW like PyTorch
    params = make_bottleneck_params(kp, inplanes, planes, downsample=False)

    out = bottleneck_forward(x, params, stride=stride)
    out = jax.block_until_ready(out)

    ref = _reference_bottleneck(x, params, stride=stride)
    assert out.shape == ref.shape == (N, planes * 4, H, W), out.shape
    max_err = float(jnp.max(jnp.abs(out - ref)))
    assert jnp.allclose(out, ref, atol=2e-3, rtol=2e-3), max_err

    print("KERNEL_OK")
</pallas_src>

<mosaic_0001>
module attributes {stable_mosaic.version = 11 : i64} {
  func.func @_conv1x1_kernel(%arg0: i32, %arg1: i32, %arg2: memref<256x128xf32, #tpu.memory_space<vmem>>, %arg3: memref<128x128xf32, #tpu.memory_space<vmem>>, %arg4: memref<1x128xf32, #tpu.memory_space<vmem>>, %arg5: memref<256x128xf32, #tpu.memory_space<vmem>>) attributes {dimension_semantics = [#tpu.dimension_semantics<parallel>, #tpu.dimension_semantics<parallel>], iteration_bounds = array<i64: 2, 1>, scalar_prefetch = 0 : i64, scratch_operands = 0 : i64, tpu.core_type = #tpu.core_type<tc>, window_params = [{transform_indices = @transform_0, window_bounds = array<i64: 256, 128>}, {transform_indices = @transform_1, window_bounds = array<i64: 128, 128>}, {transform_indices = @transform_2, window_bounds = array<i64: 1, 128>}, {transform_indices = @transform_3, window_bounds = array<i64: 256, 128>}]} {
    %c0 = arith.constant 0 : index
    %c0_0 = arith.constant 0 : index
    %0 = vector.load %arg2[%c0, %c0_0] : memref<256x128xf32, #tpu.memory_space<vmem>>, vector<256x128xf32>
    %c0_1 = arith.constant 0 : index
    %c0_2 = arith.constant 0 : index
    %1 = vector.load %arg3[%c0_1, %c0_2] : memref<128x128xf32, #tpu.memory_space<vmem>>, vector<128x128xf32>
    %cst = arith.constant dense<0.000000e+00> : vector<256x128xf32>
    %2 = tpu.matmul %0, %1, %cst {dimension_numbers = #tpu.dot_dimension_numbers<[1], [0], [0], [1], [0, 0, 1, 1], [], []>} : vector<256x128xf32>, vector<128x128xf32>, vector<256x128xf32> -> vector<256x128xf32>
    %c0_3 = arith.constant 0 : index
    %c0_4 = arith.constant 0 : index
    %3 = vector.load %arg4[%c0_3, %c0_4] : memref<1x128xf32, #tpu.memory_space<vmem>>, vector<1x128xf32>
    %4 = vector.broadcast %3 : vector<1x128xf32> to vector<256x128xf32>
    %5 = arith.addf %2, %4 : vector<256x128xf32>
    %cst_5 = arith.constant 0.000000e+00 : f32
    %6 = vector.broadcast %cst_5 : f32 to vector<256x128xf32>
    %7 = arith.maximumf %5, %6 : vector<256x128xf32>
    %c0_6 = arith.constant 0 : index
    %c0_7 = arith.constant 0 : index
    %8 = vector.load %arg5[%c0_6, %c0_7] : memref<256x128xf32, #tpu.memory_space<vmem>>, vector<256x128xf32>
    tpu.vector_store %arg5[%c0_6, %c0_7], %7 {strides = array<i32>} : memref<256x128xf32, #tpu.memory_space<vmem>>, vector<256x128xf32>,
    return
  }
  func.func @transform_0(%arg0: i32, %arg1: i32) -> (i32, i32) {
    %c0_i32 = arith.constant 0 : i32
    %c0_i32_0 = arith.constant 0 : i32
    return %arg0, %c0_i32 : i32, i32
  }
  func.func @transform_1(%arg0: i32, %arg1: i32) -> (i32, i32) {
    %c0_i32 = arith.constant 0 : i32
    %c0_i32_0 = arith.constant 0 : i32
    return %c0_i32, %arg1 : i32, i32
  }
  func.func @transform_2(%arg0: i32, %arg1: i32) -> (i32, i32) {
    %c0_i32 = arith.constant 0 : i32
    %c0_i32_0 = arith.constant 0 : i32
    return %c0_i32, %arg1 : i32, i32
  }
  func.func @transform_3(%arg0: i32, %arg1: i32) -> (i32, i32) {
    %c0_i32 = arith.constant 0 : i32
    return %arg0, %arg1 : i32, i32
  }
}

</mosaic_0001>

<llo_original>
// kernel: tpu_custom_call.1
$region0: #{tpu_custom_call.1}
  #allocation0 [shape = 'u32[]', space=smem, size = 0x4, offset = 0x4, fixed_abs, tag = 'smem constant byte address 0x4 - core index']
  #allocation1 [shape = 'u32[144,128]{1,0:T(1,128)}', space=vmem, size = 0x12000, scoped, tag = 'internal scratch']
  %s0 = inlined_call_operand.hbm [shape: f32[512,128], index: 0, kind: input, shape index: {}]
  %s1 = inlined_call_operand.hbm [shape: f32[128,128], index: 1, kind: input, shape index: {}]
  %s2 = inlined_call_operand.vmem [shape: f32[1,128], index: 2, kind: input, shape index: {}]
  %s3 = inlined_call_operand.hbm [shape: f32[512,128], index: 3, kind: output, shape index: {}]
  %s4 = sld [smem:[#allocation0]]
  $region53: #{tpu_custom_call.1} parent=0
    _
  %s6 = ssub.s32 1, %s4
  %s7 = scalar_select 0, %s6, %s4
  $region1: #{tpu_custom_call.1} parent=0
    #allocation2 [shape = 'u8[262144]{0}', space=vmem, size = 0x40000, scoped, tag = 'input window, operand 0']
    #allocation3 [shape = 's32[2]{0}', space=sflag, size = 0x8, scoped, tag = 'scoped memory for tpu_custom_call.1']
    #allocation4 [shape = 's32[2]{0}', space=sflag, size = 0x8, scoped, tag = 'scoped memory for tpu_custom_call.1']
    #allocation5 [shape = 'u8[65536]{0}', space=vmem, size = 0x10000, scoped, tag = 'input window, operand 1, single buffered']
    #allocation6 [shape = 's32[1]{0}', space=sflag, size = 0x4, scoped, tag = 'scoped memory for tpu_custom_call.1']
    #allocation7 [shape = 'u8[262144]{0}', space=vmem, size = 0x40000, scoped, tag = 'output window, operand 0']
    %8 = vsyncpa [#allocation3], 0
    %s9 = scalar_lea.sflag [#allocation3], 1
    %10 = vsyncpa %s9, 0
    %11 = vsyncpa [#allocation6], 0
    %12 = vsyncpa [#allocation4], 0
    %s13 = scalar_lea.sflag [#allocation4], 1
    %14 = vsyncpa %s13, 0
    loop: start=0, step=1, limit=4
    $region2: #{tpu_custom_call.1} parent=1 // loop_pre_header
      _
    $region3: #{tpu_custom_call.1} parent=1 // loop_header
      %s16 = sphi 0, %s20
      %p17 = scmp.ge.s32.totalorder %s16, 4
      %s23 = sphi 0, %s35
      %s24 = sphi 0, %s31
      %s25 = sphi 0, %s23
      %s26 = sphi 0, %s24
      %s27 = sphi 0, %s25
      %s28 = sphi 0, %s26
      %s38 = sphi 0, %s40
      %s41 = sphi 0, %s38
      %s42 = sphi 0, %s41
      %s58 = sphi 0, %s42
      %s64 = sphi 0, %s66
      %s67 = sphi 0, %s64
      %s68 = sphi 0, %s67
      %s84 = sphi 0, %s68
      %s90 = sphi 0, %s92
      %s93 = sphi 0, %s90
      %s94 = sphi 0, %s93
      %s110 = sphi 0, %s94
      %s118 = sphi 0, %s120
      %s121 = sphi 0, %s118
      %s122 = sphi 0, %s121
      %s138 = sphi 0, %s122
    $region4: #{tpu_custom_call.1} parent=1 // loop_header_branch
      %19 = sbr.rel (%p17) target = $region8
    $region5: #{tpu_custom_call.1} parent=1 // loop_body
      %s21 = ssub.s32 %s16, 1
      %s22 = ssub.s32 %s16, 2
      %s29 = sadd.s32 1, %s24
      %p30 = scmp.ge.s32.totalorder %s29, 1
      %s31 = scalar_select %p30, 0, %s29
      %s32 = sadd.s32 1, %s23
      %s33 = scalar_select %p30, %s32, %s23
      %p34 = scmp.ge.s32.totalorder %s33, 2
      %s35 = scalar_select %p34, 0, %s33
      %s36 = ssub.s32 %s23, %s35
      %p37 = scmp.eq.s32.totalorder %s36, 0
      %s39 = sadd.s32 %s38, 1
      %s40 = scalar_select %p37, %s38, %s39
      %p43 = pneg %p37
      %p44 = scmp.eq.s32.totalorder %s16, 1
      %p45 = por %p43, %p44
      %p46 = scmp.ne.s32.totalorder %s38, %s41
      %p47 = scmp.eq.s32.totalorder %s16, 0
      %p48 = por %p46, %p47
      %p49 = scmp.ne.s32.totalorder %s38, %s41
      %p50 = scmp.eq.s32.totalorder %s21, 1
      %p51 = por %p49, %p50
      %p52 = scmp.ne.s32.totalorder %s41, %s42
      %p53 = scmp.eq.s32.totalorder %s21, 0
      %p54 = por %p52, %p53
      %p55 = scmp.ne.s32.totalorder %s41, %s42
      %p56 = scmp.eq.s32.totalorder %s22, 1
      %p57 = por %p55, %p56
      %p59 = scmp.ne.s32.totalorder %s42, %s58
      %p60 = scmp.eq.s32.totalorder %s22, 0
      %p61 = por %p59, %p60
      %s62 = ssub.s32 %s24, %s31
      %p63 = scmp.eq.s32.totalorder %s62, 0
      %s65 = sadd.s32 %s64, 1
      %s66 = scalar_select %p63, %s64, %s65
      %p69 = pneg %p63
      %p70 = scmp.eq.s32.totalorder %s16, 1
      %p71 = por %p69, %p70
      %p72 = scmp.ne.s32.totalorder %s64, %s67
      %p73 = scmp.eq.s32.totalorder %s16, 0
      %p74 = por %p72, %p73
      %p75 = scmp.ne.s32.totalorder %s64, %s67
      %p76 = scmp.eq.s32.totalorder %s21, 1
      %p77 = por %p75, %p76
      %p78 = scmp.ne.s32.totalorder %s67, %s68
      %p79 = scmp.eq.s32.totalorder %s21, 0
      %p80 = por %p78, %p79
      %p81 = scmp.ne.s32.totalorder %s67, %s68
      %p82 = scmp.eq.s32.totalorder %s22, 1
      %p83 = por %p81, %p82
      %p85 = scmp.ne.s32.totalorder %s68, %s84
      %p86 = scmp.eq.s32.totalorder %s22, 0
      %p87 = por %p85, %p86
      %s88 = ssub.s32 %s24, %s31
      %p89 = scmp.eq.s32.totalorder %s88, 0
      %s91 = sadd.s32 %s90, 1
      %s92 = scalar_select %p89, %s90, %s91
      %p95 = pneg %p89
      %p96 = scmp.eq.s32.totalorder %s16, 1
      %p97 = por %p95, %p96
      %p98 = scmp.ne.s32.totalorder %s90, %s93
      %p99 = scmp.eq.s32.totalorder %s16, 0
      %p100 = por %p98, %p99
      %p101 = scmp.ne.s32.totalorder %s90, %s93
      %p102 = scmp.eq.s32.totalorder %s21, 1
      %p103 = por %p101, %p102
      %p104 = scmp.ne.s32.totalorder %s93, %s94
      %p105 = scmp.eq.s32.totalorder %s21, 0
      %p106 = por %p104, %p105
      %p107 = scmp.ne.s32.totalorder %s93, %s94
      %p108 = scmp.eq.s32.totalorder %s22, 1
      %p109 = por %p107, %p108
      %p111 = scmp.ne.s32.totalorder %s94, %s110
      %p112 = scmp.eq.s32.totalorder %s22, 0
      %p113 = por %p111, %p112
      %s114 = ssub.s32 %s23, %s35
      %s115 = ssub.s32 %s24, %s31
      %s116 = sor.u32 %s114, %s115
      %p117 = scmp.eq.s32.totalorder %s116, 0
      %s119 = sadd.s32 %s118, 1
      %s120 = scalar_select %p117, %s118, %s119
      %p123 = pneg %p117
      %p124 = scmp.eq.s32.totalorder %s16, 1
      %p125 = por %p123, %p124
      %p126 = scmp.ne.s32.totalorder %s118, %s121
      %p127 = scmp.eq.s32.totalorder %s16, 0
      %p128 = por %p126, %p127
      %p129 = scmp.ne.s32.totalorder %s118, %s121
      %p130 = scmp.eq.s32.totalorder %s21, 1
      %p131 = por %p129, %p130
      %p132 = scmp.ne.s32.totalorder %s121, %s122
      %p133 = scmp.eq.s32.totalorder %s21, 0
      %p134 = por %p132, %p133
      %p135 = scmp.ne.s32.totalorder %s121, %s122
      %p136 = scmp.eq.s32.totalorder %s22, 1
      %p137 = por %p135, %p136
      %p139 = scmp.ne.s32.totalorder %s122, %s138
      %p140 = scmp.eq.s32.totalorder %s22, 0
      %p141 = por %p139, %p140
      %p142 = scmp.le.s32.totalorder 1, %s16
      %p143 = scmp.lt.s32.totalorder %s16, 3
      %p144 = pnand %p142, %p143
      %p145 = pneg %p144
      // Predicated region
      $region9: #{tpu_custom_call.1} parent=5 // pred_check
        _
      $region10: #{tpu_custom_call.1} parent=5 // pred_check_branch
        %147 = sbr.rel (%p144) target = $region12
      $region11: #{tpu_custom_call.1} parent=5 // pred_region
        %s148 = ssub.s32 %s16, 1
        // Predicated region
        $region13: #{tpu_custom_call.1} parent=11 // pred_check
          %p149 = pneg %p80
        $region14: #{tpu_custom_call.1} parent=11 // pred_check_branch
          %151 = sbr.rel (%p149) target = $region16
        $region15: #{tpu_custom_call.1} parent=11 // pred_region
          %s153 = ssub.s32 2048, 2048
          %154 = vsyncadd [#allocation6], %s153
          %s155 = smul.addr %s26, 128
          %s156 = scalar_lea.hbm %s1, %s155
          %s157 = sshll.u32 [#allocation5], 4
          %s158 = int_to_ptr.vmem [resolvable:$true] %s157
          %163 = dma.hbm_to_vmem [thread:$0]  %s156, 2048, %s158, [#allocation6], 128, 128, 8
        $region16: #{tpu_custom_call.1} parent=11 // pred_fallthru
          _
        // Predicated region
        $region17: #{tpu_custom_call.1} parent=11 // pred_check
          %p164 = pneg %p106
        $region18: #{tpu_custom_call.1} parent=11 // pred_check_branch
          %166 = sbr.rel (%p164) target = $region20
        $region19: #{tpu_custom_call.1} parent=11 // pred_region
          %p167 = scmp.lt.s32.totalorder %s26, 0
          %s168 = scalar_select %p167, %s26, 0
          %s169 = scalar_lea.vmem %s2, %s168
        $region20: #{tpu_custom_call.1} parent=11 // pred_fallthru
          _
      $region12: #{tpu_custom_call.1} parent=5 // pred_fallthru
        _
      %p170 = scmp.lt.s32.totalorder %s16, 2
      // Predicated region
      $region21: #{tpu_custom_call.1} parent=5 // pred_check
        %p171 = pneg %p170
      $region22: #{tpu_custom_call.1} parent=5 // pred_check_branch
        %173 = sbr.rel (%p171) target = $region24
      $region23: #{tpu_custom_call.1} parent=5 // pred_region
        // Predicated region
        $region25: #{tpu_custom_call.1} parent=23 // pred_check
          %p174 = pneg %p48
        $region26: #{tpu_custom_call.1} parent=23 // pred_check_branch
          %176 = sbr.rel (%p174) target = $region28
        $region27: #{tpu_custom_call.1} parent=23 // pred_region
          %s177 = sand.u32 %s38, 1
          %s178 = scalar_lea.sflag [#allocation3], %s177
          %s179 = sand.u32 %s38, 1
          %s180 = smul.addr %s179, 256
          %s181 = scalar_lea.vmem [#allocation2], %s180
          %s182 = smul.u32 32, %s23
          %s184 = ssub.s32 4096, 4096
          %185 = vsyncadd %s178, %s184
          %s186 = smul.addr %s182, 128
          %s187 = scalar_lea.hbm %s0, %s186
          %s188 = sshll.u32 %s181, 4
          %s189 = int_to_ptr.vmem [resolvable:$true] %s188
          %194 = dma.hbm_to_vmem [thread:$0]  %s187, 4096, %s189, %s178, 128, 128, 8
        $region28: #{tpu_custom_call.1} parent=23 // pred_fallthru
          _
      $region24: #{tpu_custom_call.1} parent=5 // pred_fallthru
        _
      %p195 = scmp.le.s32.totalorder 1, %s16
      %p196 = scmp.lt.s32.totalorder %s16, 3
      %p197 = pnand %p195, %p196
      %p198 = pneg %p197
      // Predicated region
      $region29: #{tpu_custom_call.1} parent=5 // pred_check
        _
      $region30: #{tpu_custom_call.1} parent=5 // pred_check_branch
        %200 = sbr.rel (%p197) target = $region32
      $region31: #{tpu_custom_call.1} parent=5 // pred_region
        %s201 = ssub.s32 %s16, 1
        %s202 = sand.u32 %s41, 1
        %s203 = scalar_lea.sflag [#allocation3], %s202
        %s204 = sand.u32 %s41, 1
        %s205 = smul.addr %s204, 256
        %s206 = scalar_lea.vmem [#allocation2], %s205
        // Predicated region
        $region33: #{tpu_custom_call.1} parent=31 // pred_check
          %p207 = pneg %p54
        $region34: #{tpu_custom_call.1} parent=31 // pred_check_branch
          %209 = sbr.rel (%p207) target = $region36
        $region35: #{tpu_custom_call.1} parent=31 // pred_region
          %210 = dma.done %s203, 4096
        $region36: #{tpu_custom_call.1} parent=31 // pred_fallthru
          _
        // Predicated region
        $region37: #{tpu_custom_call.1} parent=31 // pred_check
          %p211 = pneg %p80
        $region38: #{tpu_custom_call.1} parent=31 // pred_check_branch
          %213 = sbr.rel (%p211) target = $region40
        $region39: #{tpu_custom_call.1} parent=31 // pred_region
          %214 = dma.done [#allocation6], 2048
        $region40: #{tpu_custom_call.1} parent=31 // pred_fallthru
          _
        %s215 = sand.u32 %s41, 1
        %s216 = scalar_lea.sflag [#allocation3], %s215
        %s217 = sand.u32 %s41, 1
        %s218 = smul.addr %s217, 256
        %s219 = scalar_lea.vmem [#allocation2], %s218
        %p220 = pneg %p54
        %p221 = pneg %p51
        %p222 = pneg %p80
        %p223 = pneg %p77
        %p224 = scmp.lt.s32.totalorder %s26, 0
        %s225 = scalar_select %p224, %s26, 0
        %s226 = scalar_lea.vmem %s2, %s225
        %p227 = pneg %p106
        %p228 = pneg %p103
        %p229 = pneg %p134
        %p230 = pneg %p131
        %s231 = sand.u32 %s121, 1
        %s232 = scalar_lea.sflag [#allocation4], %s231
        %s233 = sand.u32 %s121, 1
        %s234 = smul.addr %s233, 256
        %s235 = scalar_lea.vmem [#allocation7], %s234
        %s236 = smul.u32 32, %s25
        %p237 = scmp.lt.s32.totalorder %s26, 0
        %s238 = scalar_select %p237, %s26, 0
        %s239 = scalar_lea.vmem %s2, %s238
        %s240 = smul.u32 32, %s25
        %v241 = vld [vmem:[%s206] sm:$0xff]
        %v242 = vld [vmem:[%s206 + $0x8] sm:$0xff]
        %v243 = vld [vmem:[%s206 + $0x10] sm:$0xff]
        %v244 = vld [vmem:[%s206 + $0x18] sm:$0xff]
        %v245 = vld [vmem:[%s206 + $0x20] sm:$0xff]
        %v246 = vld [vmem:[%s206 + $0x28] sm:$0xff]
        %v247 = vld [vmem:[%s206 + $0x30] sm:$0xff]
        %v248 = vld [vmem:[%s206 + $0x38] sm:$0xff]
        %v249 = vld [vmem:[%s206 + $0x40] sm:$0xff]
        %v250 = vld [vmem:[%s206 + $0x48] sm:$0xff]
        %v251 = vld [vmem:[%s206 + $0x50] sm:$0xff]
        %v252 = vld [vmem:[%s206 + $0x58] sm:$0xff]
        %v253 = vld [vmem:[%s206 + $0x60] sm:$0xff]
        %v254 = vld [vmem:[%s206 + $0x68] sm:$0xff]
        %v255 = vld [vmem:[%s206 + $0x70] sm:$0xff]
        %v256 = vld [vmem:[%s206 + $0x78] sm:$0xff]
        %v257 = vld [vmem:[%s206 + $0x80] sm:$0xff]
        %v258 = vld [vmem:[%s206 + $0x88] sm:$0xff]
        %v259 = vld [vmem:[%s206 + $0x90] sm:$0xff]
        %v260 = vld [vmem:[%s206 + $0x98] sm:$0xff]
        %v261 = vld [vmem:[%s206 + $0xa0] sm:$0xff]
        %v262 = vld [vmem:[%s206 + $0xa8] sm:$0xff]
        %v263 = vld [vmem:[%s206 + $0xb0] sm:$0xff]
        %v264 = vld [vmem:[%s206 + $0xb8] sm:$0xff]
        %v265 = vld [vmem:[%s206 + $0xc0] sm:$0xff]
        %v266 = vld [vmem:[%s206 + $0xc8] sm:$0xff]
        %v267 = vld [vmem:[%s206 + $0xd0] sm:$0xff]
        %v268 = vld [vmem:[%s206 + $0xd8] sm:$0xff]
        %v269 = vld [vmem:[%s206 + $0xe0] sm:$0xff]
        %v270 = vld [vmem:[%s206 + $0xe8] sm:$0xff]
        %v271 = vld [vmem:[%s206 + $0xf0] sm:$0xff]
        %v272 = vld [vmem:[%s206 + $0xf8] sm:$0xff]
        %v273 = vld [vmem:[#allocation5] sm:$0xff]
        %v274 = vld [vmem:[#allocation5 + $0x8] sm:$0xff]
        %v275 = vld [vmem:[#allocation5 + $0x10] sm:$0xff]
        %v276 = vld [vmem:[#allocation5 + $0x18] sm:$0xff]
        %v277 = vld [vmem:[#allocation5 + $0x20] sm:$0xff]
        %v278 = vld [vmem:[#allocation5 + $0x28] sm:$0xff]
        %v279 = vld [vmem:[#allocation5 + $0x30] sm:$0xff]
        %v280 = vld [vmem:[#allocation5 + $0x38] sm:$0xff]
        %v281 = vld [vmem:[#allocation5 + $0x40] sm:$0xff]
        %v282 = vld [vmem:[#allocation5 + $0x48] sm:$0xff]
        %v283 = vld [vmem:[#allocation5 + $0x50] sm:$0xff]
        %v284 = vld [vmem:[#allocation5 + $0x58] sm:$0xff]
        %v285 = vld [vmem:[#allocation5 + $0x60] sm:$0xff]
        %v286 = vld [vmem:[#allocation5 + $0x68] sm:$0xff]
        %v287 = vld [vmem:[#allocation5 + $0x70] sm:$0xff]
        %v288 = vld [vmem:[#allocation5 + $0x78] sm:$0xff]
        %v289 = vld [vmem:[%s239] sm:$0x1]
        %v291 = vlaneseq
        %v292 = vshrl.u32 %v291, 7
        %v293 = vsub.s32 0, %v292
        %v294 = vrot.slane %v289, %v293
        %296 = vmatprep.subr.mxu0 0.0
        %297 = vmatpush1.msra.mxu0 %v288
        %298 = vmatprep.subr.mxu0 0.0
        %299 = vmatpush1.msra.mxu0 %v287
        %300 = vmatprep.subr.mxu0 0.0
        %301 = vmatpush1.msra.mxu0 %v286
        %302 = vmatprep.subr.mxu0 0.0
        %303 = vmatpush1.msra.mxu0 %v285
        %304 = vmatprep.subr.mxu0 0.0
        %305 = vmatpush1.msra.mxu0 %v284
        %306 = vmatprep.subr.mxu0 0.0
        %307 = vmatpush1.msra.mxu0 %v283
        %308 = vmatprep.subr.mxu0 0.0
        %309 = vmatpush1.msra.mxu0 %v282
        %310 = vmatprep.subr.mxu0 0.0
        %311 = vmatpush1.msra.mxu0 %v281
        %312 = vmatprep.subr.mxu0 0.0
        %313 = vmatpush1.msra.mxu0 %v280
        %314 = vmatprep.subr.mxu0 0.0
        %315 = vmatpush1.msra.mxu0 %v279
        %316 = vmatprep.subr.mxu0 0.0
        %317 = vmatpush1.msra.mxu0 %v278
        %318 = vmatprep.subr.mxu0 0.0
        %319 = vmatpush1.msra.mxu0 %v277
        %320 = vmatprep.subr.mxu0 0.0
        %321 = vmatpush1.msra.mxu0 %v276
        %322 = vmatprep.subr.mxu0 0.0
        %323 = vmatpush1.msra.mxu0 %v275
        %324 = vmatprep.subr.mxu0 0.0
        %325 = vmatpush1.msra.mxu0 %v274
        %326 = vmatprep.subr.mxu0 0.0
        %327 = vmatpush1.msra.mxu0 %v273
        %328 = vmatprep.subr.mxu0 0.0
        %329 = vmatpush2.msra.mxu0 0.0
        %330 = vmatprep.subr.mxu0 0.0
        %331 = vmatpush2.msra.mxu0 0.0
        %332 = vmatprep.subr.mxu0 0.0
        %333 = vmatpush2.msra.mxu0 0.0
        %334 = vmatprep.subr.mxu0 0.0
        %335 = vmatpush2.msra.mxu0 0.0
        %336 = vmatprep.subr.mxu0 0.0
        %337 = vmatpush2.msra.mxu0 0.0
        %338 = vmatprep.subr.mxu0 0.0
        %339 = vmatpush2.msra.mxu0 0.0
        %340 = vmatprep.subr.mxu0 0.0
        %341 = vmatpush2.msra.mxu0 0.0
        %342 = vmatprep.subr.mxu0 0.0
        %343 = vmatpush2.msra.mxu0 0.0
        %344 = vmatprep.subr.mxu0 0.0
        %345 = vmatpush2.msra.mxu0 0.0
        %346 = vmatprep.subr.mxu0 0.0
        %347 = vmatpush2.msra.mxu0 0.0
        %348 = vmatprep.subr.mxu0 0.0
        %349 = vmatpush2.msra.mxu0 0.0
        %350 = vmatprep.subr.mxu0 0.0
        %351 = vmatpush2.msra.mxu0 0.0
        %352 = vmatprep.subr.mxu0 0.0
        %353 = vmatpush2.msra.mxu0 0.0
        %354 = vmatprep.subr.mxu0 0.0
        %355 = vmatpush2.msra.mxu0 0.0
        %356 = vmatprep.subr.mxu0 0.0
        %357 = vmatpush2.msra.mxu0 0.0
        %358 = vmatprep.subr.mxu0 0.0
        %359 = vmatpush2.msra.mxu0 0.0
        %360 = vmatprep.mubr.f32.mxu0 0.0
        %361 = vmatmul.mubr.f32.gmra.mxu0 %v241
        %v362 = vpop.f32.mrf.mxu0
        %v363 = vadd.f32 %v294, %v362
        %v364 = vpop.f32.mrf.mxu0
        %365 = vmatprep.mubr.f32.mxu0 0.0
        %366 = vmatmul.mubr.f32.gmra.mxu0 %v242
        %v367 = vpop.f32.mrf.mxu0
        %v368 = vadd.f32 %v294, %v367
        %v369 = vpop.f32.mrf.mxu0
        %370 = vmatprep.mubr.f32.mxu0 0.0
        %371 = vmatmul.mubr.f32.gmra.mxu0 %v243
        %v372 = vpop.f32.mrf.mxu0
        %v373 = vadd.f32 %v294, %v372
        %v374 = vpop.f32.mrf.mxu0
        %375 = vmatprep.mubr.f32.mxu0 0.0
        %376 = vmatmul.mubr.f32.gmra.mxu0 %v244
        %v377 = vpop.f32.mrf.mxu0
        %v378 = vadd.f32 %v294, %v377
        %v379 = vpop.f32.mrf.mxu0
        %380 = vmatprep.mubr.f32.mxu0 0.0
        %381 = vmatmul.mubr.f32.gmra.mxu0 %v245
        %v382 = vpop.f32.mrf.mxu0
        %v383 = vadd.f32 %v294, %v382
        %v384 = vpop.f32.mrf.mxu0
        %385 = vmatprep.mubr.f32.mxu0 0.0
        %386 = vmatmul.mubr.f32.gmra.mxu0 %v246
        %v387 = vpop.f32.mrf.mxu0
        %v388 = vadd.f32 %v294, %v387
        %v389 = vpop.f32.mrf.mxu0
        %390 = vmatprep.mubr.f32.mxu0 0.0
        %391 = vmatmul.mubr.f32.gmra.mxu0 %v247
        %v392 = vpop.f32.mrf.mxu0
        %v393 = vadd.f32 %v294, %v392
        %v394 = vpop.f32.mrf.mxu0
        %395 = vmatprep.mubr.f32.mxu0 0.0
        %396 = vmatmul.mubr.f32.gmra.mxu0 %v248
        %v397 = vpop.f32.mrf.mxu0
        %v398 = vadd.f32 %v294, %v397
        %v399 = vpop.f32.mrf.mxu0
        %400 = vmatprep.mubr.f32.mxu0 0.0
        %401 = vmatmul.mubr.f32.gmra.mxu0 %v249
        %v402 = vpop.f32.mrf.mxu0
        %v403 = vadd.f32 %v294, %v402
        %v404 = vpop.f32.mrf.mxu0
        %405 = vmatprep.mubr.f32.mxu0 0.0
        %406 = vmatmul.mubr.f32.gmra.mxu0 %v250
        %v407 = vpop.f32.mrf.mxu0
        %v408 = vadd.f32 %v294, %v407
        %v409 = vpop.f32.mrf.mxu0
        %410 = vmatprep.mubr.f32.mxu0 0.0
        %411 = vmatmul.mubr.f32.gmra.mxu0 %v251
        %v412 = vpop.f32.mrf.mxu0
        %v413 = vadd.f32 %v294, %v412
        %v414 = vpop.f32.mrf.mxu0
        %415 = vmatprep.mubr.f32.mxu0 0.0
        %416 = vmatmul.mubr.f32.gmra.mxu0 %v252
        %v417 = vpop.f32.mrf.mxu0
        %v418 = vadd.f32 %v294, %v417
        %v419 = vpop.f32.mrf.mxu0
        %420 = vmatprep.mubr.f32.mxu0 0.0
        %421 = vmatmul.mubr.f32.gmra.mxu0 %v253
        %v422 = vpop.f32.mrf.mxu0
        %v423 = vadd.f32 %v294, %v422
        %v424 = vpop.f32.mrf.mxu0
        %425 = vmatprep.mubr.f32.mxu0 0.0
        %426 = vmatmul.mubr.f32.gmra.mxu0 %v254
        %v427 = vpop.f32.mrf.mxu0
        %v428 = vadd.f32 %v294, %v427
        %v429 = vpop.f32.mrf.mxu0
        %430 = vmatprep.mubr.f32.mxu0 0.0
        %431 = vmatmul.mubr.f32.gmra.mxu0 %v255
        %v432 = vpop.f32.mrf.mxu0
        %v433 = vadd.f32 %v294, %v432
        %v434 = vpop.f32.mrf.mxu0
        %435 = vmatprep.mubr.f32.mxu0 0.0
        %436 = vmatmul.mubr.f32.gmra.mxu0 %v256
        %v437 = vpop.f32.mrf.mxu0
        %v438 = vadd.f32 %v294, %v437
        %v439 = vpop.f32.mrf.mxu0
        %440 = vmatprep.mubr.f32.mxu0 0.0
        %441 = vmatmul.mubr.f32.gmra.mxu0 %v257
        %v442 = vpop.f32.mrf.mxu0
        %v443 = vadd.f32 %v294, %v442
        %v444 = vpop.f32.mrf.mxu0
        %445 = vmatprep.mubr.f32.mxu0 0.0
        %446 = vmatmul.mubr.f32.gmra.mxu0 %v258
        %v447 = vpop.f32.mrf.mxu0
        %v448 = vadd.f32 %v294, %v447
        %v449 = vpop.f32.mrf.mxu0
        %450 = vmatprep.mubr.f32.mxu0 0.0
        %451 = vmatmul.mubr.f32.gmra.mxu0 %v259
        %v452 = vpop.f32.mrf.mxu0
        %v453 = vadd.f32 %v294, %v452
        %v454 = vpop.f32.mrf.mxu0
        %455 = vmatprep.mubr.f32.mxu0 0.0
        %456 = vmatmul.mubr.f32.gmra.mxu0 %v260
        %v457 = vpop.f32.mrf.mxu0
        %v458 = vadd.f32 %v294, %v457
        %v459 = vpop.f32.mrf.mxu0
        %460 = vmatprep.mubr.f32.mxu0 0.0
        %461 = vmatmul.mubr.f32.gmra.mxu0 %v261
        %v462 = vpop.f32.mrf.mxu0
        %v463 = vadd.f32 %v294, %v462
        %v464 = vpop.f32.mrf.mxu0
        %465 = vmatprep.mubr.f32.mxu0 0.0
        %466 = vmatmul.mubr.f32.gmra.mxu0 %v262
        %v467 = vpop.f32.mrf.mxu0
        %v468 = vadd.f32 %v294, %v467
        %v469 = vpop.f32.mrf.mxu0
        %470 = vmatprep.mubr.f32.mxu0 0.0
        %471 = vmatmul.mubr.f32.gmra.mxu0 %v263
        %v472 = vpop.f32.mrf.mxu0
        %v473 = vadd.f32 %v294, %v472
        %v474 = vpop.f32.mrf.mxu0
        %475 = vmatprep.mubr.f32.mxu0 0.0
        %476 = vmatmul.mubr.f32.gmra.mxu0 %v264
        %v477 = vpop.f32.mrf.mxu0
        %v478 = vadd.f32 %v294, %v477
        %v479 = vpop.f32.mrf.mxu0
        %480 = vmatprep.mubr.f32.mxu0 0.0
        %481 = vmatmul.mubr.f32.gmra.mxu0 %v265
        %v482 = vpop.f32.mrf.mxu0
        %v483 = vadd.f32 %v294, %v482
        %v484 = vpop.f32.mrf.mxu0
        %485 = vmatprep.mubr.f32.mxu0 0.0
        %486 = vmatmul.mubr.f32.gmra.mxu0 %v266
        %v487 = vpop.f32.mrf.mxu0
        %v488 = vadd.f32 %v294, %v487
        %v489 = vpop.f32.mrf.mxu0
        %490 = vmatprep.mubr.f32.mxu0 0.0
        %491 = vmatmul.mubr.f32.gmra.mxu0 %v267
        %v492 = vpop.f32.mrf.mxu0
        %v493 = vadd.f32 %v294, %v492
        %v494 = vpop.f32.mrf.mxu0
        %495 = vmatprep.mubr.f32.mxu0 0.0
        %496 = vmatmul.mubr.f32.gmra.mxu0 %v268
        %v497 = vpop.f32.mrf.mxu0
        %v498 = vadd.f32 %v294, %v497
        %v499 = vpop.f32.mrf.mxu0
        %500 = vmatprep.mubr.f32.mxu0 0.0
        %501 = vmatmul.mubr.f32.gmra.mxu0 %v269
        %v502 = vpop.f32.mrf.mxu0
        %v503 = vadd.f32 %v294, %v502
        %v504 = vpop.f32.mrf.mxu0
        %505 = vmatprep.mubr.f32.mxu0 0.0
        %506 = vmatmul.mubr.f32.gmra.mxu0 %v270
        %v507 = vpop.f32.mrf.mxu0
        %v508 = vadd.f32 %v294, %v507
        %v509 = vpop.f32.mrf.mxu0
        %510 = vmatprep.mubr.f32.mxu0 0.0
        %511 = vmatmul.mubr.f32.gmra.mxu0 %v271
        %v512 = vpop.f32.mrf.mxu0
        %v513 = vadd.f32 %v294, %v512
        %v514 = vpop.f32.mrf.mxu0
        %515 = vmatprep.mubr.f32.mxu0 0.0
        %516 = vmatmul.mubr.f32.gmra.mxu0 %v272
        %v517 = vpop.f32.mrf.mxu0
        %v518 = vadd.f32 %v294, %v517
        %v519 = vpop.f32.mrf.mxu0
        %520 = vdwg.mxu0
        %v521 = vmax.f32 %v363, 0.0
        %v522 = vmax.f32 %v368, 0.0
        %v523 = vmax.f32 %v373, 0.0
        %v524 = vmax.f32 %v378, 0.0
        %v525 = vmax.f32 %v383, 0.0
        %v526 = vmax.f32 %v388, 0.0
        %v527 = vmax.f32 %v393, 0.0
        %v528 = vmax.f32 %v398, 0.0
        %v529 = vmax.f32 %v403, 0.0
        %v530 = vmax.f32 %v408, 0.0
        %v531 = vmax.f32 %v413, 0.0
        %v532 = vmax.f32 %v418, 0.0
        %v533 = vmax.f32 %v423, 0.0
        %v534 = vmax.f32 %v428, 0.0
        %v535 = vmax.f32 %v433, 0.0
        %v536 = vmax.f32 %v438, 0.0
        %v537 = vmax.f32 %v443, 0.0
        %v538 = vmax.f32 %v448, 0.0
        %v539 = vmax.f32 %v453, 0.0
        %v540 = vmax.f32 %v458, 0.0
        %v541 = vmax.f32 %v463, 0.0
        %v542 = vmax.f32 %v468, 0.0
        %v543 = vmax.f32 %v473, 0.0
        %v544 = vmax.f32 %v478, 0.0
        %v545 = vmax.f32 %v483, 0.0
        %v546 = vmax.f32 %v488, 0.0
        %v547 = vmax.f32 %v493, 0.0
        %v548 = vmax.f32 %v498, 0.0
        %v549 = vmax.f32 %v503, 0.0
        %v550 = vmax.f32 %v508, 0.0
        %v551 = vmax.f32 %v513, 0.0
        %v552 = vmax.f32 %v518, 0.0
        %553 = vst [vmem:[%s235] sm:$0xff] %v521
        %554 = vst [vmem:[%s235 + $0x8] sm:$0xff] %v522
        %555 = vst [vmem:[%s235 + $0x10] sm:$0xff] %v523
        %556 = vst [vmem:[%s235 + $0x18] sm:$0xff] %v524
        %557 = vst [vmem:[%s235 + $0x20] sm:$0xff] %v525
        %558 = vst [vmem:[%s235 + $0x28] sm:$0xff] %v526
        %559 = vst [vmem:[%s235 + $0x30] sm:$0xff] %v527
        %560 = vst [vmem:[%s235 + $0x38] sm:$0xff] %v528
        %561 = vst [vmem:[%s235 + $0x40] sm:$0xff] %v529
        %562 = vst [vmem:[%s235 + $0x48] sm:$0xff] %v530
        %563 = vst [vmem:[%s235 + $0x50] sm:$0xff] %v531
        %564 = vst [vmem:[%s235 + $0x58] sm:$0xff] %v532
        %565 = vst [vmem:[%s235 + $0x60] sm:$0xff] %v533
        %566 = vst [vmem:[%s235 + $0x68] sm:$0xff] %v534
        %567 = vst [vmem:[%s235 + $0x70] sm:$0xff] %v535
        %568 = vst [vmem:[%s235 + $0x78] sm:$0xff] %v536
        %569 = vst [vmem:[%s235 + $0x80] sm:$0xff] %v537
        %570 = vst [vmem:[%s235 + $0x88] sm:$0xff] %v538
        %571 = vst [vmem:[%s235 + $0x90] sm:$0xff] %v539
        %572 = vst [vmem:[%s235 + $0x98] sm:$0xff] %v540
        %573 = vst [vmem:[%s235 + $0xa0] sm:$0xff] %v541
        %574 = vst [vmem:[%s235 + $0xa8] sm:$0xff] %v542
        %575 = vst [vmem:[%s235 + $0xb0] sm:$0xff] %v543
        %576 = vst [vmem:[%s235 + $0xb8] sm:$0xff] %v544
        %577 = vst [vmem:[%s235 + $0xc0] sm:$0xff] %v545
        %578 = vst [vmem:[%s235 + $0xc8] sm:$0xff] %v546
        %579 = vst [vmem:[%s235 + $0xd0] sm:$0xff] %v547
        %580 = vst [vmem:[%s235 + $0xd8] sm:$0xff] %v548
        %581 = vst [vmem:[%s235 + $0xe0] sm:$0xff] %v549
        %582 = vst [vmem:[%s235 + $0xe8] sm:$0xff] %v550
        %583 = vst [vmem:[%s235 + $0xf0] sm:$0xff] %v551
        %584 = vst [vmem:[%s235 + $0xf8] sm:$0xff] %v552
        %s585 = sand.u32 %s121, 1
        %s586 = scalar_lea.sflag [#allocation4], %s585
        %s587 = sand.u32 %s121, 1
        %s588 = smul.addr %s587, 256
        %s589 = scalar_lea.vmem [#allocation7], %s588
        // Predicated region
        $region41: #{tpu_custom_call.1} parent=31 // pred_check
          %p590 = pneg %p131
        $region42: #{tpu_custom_call.1} parent=31 // pred_check_branch
          %592 = sbr.rel (%p590) target = $region44
        $region43: #{tpu_custom_call.1} parent=31 // pred_region
          %s593 = smul.u32 32, %s25
          %s595 = ssub.s32 4096, 4096
          %596 = vsyncadd %s586, %s595
          %s597 = sadd.s32 %s26, %s593
          %s598 = smul.addr %s597, 128
          %s599 = scalar_lea.hbm %s3, %s598
          %s600 = sshll.u32 %s589, 4
          %s601 = int_to_ptr.vmem [resolvable:$true] %s600
          %606 = dma.vmem_to_hbm [thread:$0]  %s601, 4096, %s599, %s586, 128, 128, 8
        $region44: #{tpu_custom_call.1} parent=31 // pred_fallthru
          _
      $region32: #{tpu_custom_call.1} parent=5 // pred_fallthru
        _
      %p607 = scmp.le.s32.totalorder 2, %s16
      // Predicated region
      $region45: #{tpu_custom_call.1} parent=5 // pred_check
        %p608 = pneg %p607
      $region46: #{tpu_custom_call.1} parent=5 // pred_check_branch
        %610 = sbr.rel (%p608) target = $region48
      $region47: #{tpu_custom_call.1} parent=5 // pred_region
        %s611 = ssub.s32 %s16, 2
        // Predicated region
        $region49: #{tpu_custom_call.1} parent=47 // pred_check
          %p612 = pneg %p137
        $region50: #{tpu_custom_call.1} parent=47 // pred_check_branch
          %614 = sbr.rel (%p612) target = $region52
        $region51: #{tpu_custom_call.1} parent=47 // pred_region
          %s615 = sand.u32 %s122, 1
          %s616 = scalar_lea.sflag [#allocation4], %s615
          %s617 = sand.u32 %s122, 1
          %s618 = smul.addr %s617, 256
          %s619 = scalar_lea.vmem [#allocation7], %s618
          %620 = dma.done %s616, 4096
        $region52: #{tpu_custom_call.1} parent=47 // pred_fallthru
          _
      $region48: #{tpu_custom_call.1} parent=5 // pred_fallthru
        _
    $region6: #{tpu_custom_call.1} parent=1 // loop_footer
      %s20 = sadd.s32 1, %s16
    $region7: #{tpu_custom_call.1} parent=1 // loop_footer_branch
      %15 = sbr.rel target = $region3
    $region8: #{tpu_custom_call.1} parent=1 // loop_exit
      _
    %621 = vsyncpa [#allocation3], 1
    %s622 = scalar_lea.sflag [#allocation3], 1
    %623 = vsyncpa %s622, 1
    %624 = vsyncpa [#allocation6], 1
    %625 = vsyncpa [#allocation4], 1
    %s626 = scalar_lea.sflag [#allocation4], 1
    %627 = vsyncpa %s626, 1

</llo_original>
